<compile_context>
chip_gen: v7x
topology: tpu7x:2x2x1
jax: 0.10.0
libtpu: 0.0.40
codegen_flags: <defaults>
</compile_context>

<pallas_src>
import functools

import jax
import jax.numpy as jnp
from jax.experimental import pallas as pl
from jax.experimental.pallas import tpu as pltpu


N_PAD = 128  # fc2 columns padded to a full 128-lane MXU tile (compute only)


def _round_up(n, m):
    return ((n + m - 1) // m) * m


_DIM_SEMANTICS_CACHE = None


def _batch_dim_semantics():
    """("parallel",) everywhere; (CORE_PARALLEL,) when >=2 TensorCores (v7x)."""
    global _DIM_SEMANTICS_CACHE
    if _DIM_SEMANTICS_CACHE is None:
        sem = ("parallel",)
        try:
            info = pltpu.get_tpu_info()
            n_cores = None
            for attr in ("num_cores", "core_count", "num_tensorcores",
                         "tensorcore_count", "cores_per_chip"):
                val = getattr(info, attr, None)
                if val:
                    n_cores = int(val)
                    break
            if n_cores is not None and n_cores >= 2 and hasattr(pltpu, "CORE_PARALLEL"):
                sem = (pltpu.CORE_PARALLEL,)
        except Exception:
            sem = ("parallel",)
        _DIM_SEMANTICS_CACHE = sem
    return _DIM_SEMANTICS_CACHE


def policy_kernel(x_ref, w1_ref, b1_ref, w2_ref, b2_ref, o_ref):
    # fc1: bf16 MXU operands, f32 accumulate; bias + tanh in f32 (VPU/EUP).
    x = x_ref[...].astype(jnp.bfloat16)
    h = jnp.dot(x, w1_ref[...], preferred_element_type=jnp.float32)
    h = jnp.tanh(h + b1_ref[...])
    # fc2 on the MXU with bf16 operands, f32 accumulate, f32 tanh.
    o = jnp.dot(h.astype(jnp.bfloat16), w2_ref[...],
                preferred_element_type=jnp.float32)
    o = jnp.tanh(o + b2_ref[...])
    # Store only the real num_classes columns (narrow output block): this is
    # the HBM-writeback fix -- no 128-wide padded f32 slab ever hits HBM.
    c = o_ref.shape[1]
    o_ref[...] = o[:, :c].astype(o_ref.dtype)


def prepare_policy_params(w1, b1, w2, b2):
    """One-time weight prep -- hoisted out of the hot path; cache the result.

    w1: [8, 128], b1: [128], w2: [128, C], b2: [C] (transposed vs. PyTorch's
    [out, in] convention so the kernel computes x @ w directly).
    Returns (w1_bf16, b1_f32[1,128], w2_padded_bf16[128,128], b2_padded_f32[1,128]).
    """
    C = w2.shape[1]
    assert w1.shape == (8, 128) and b1.shape == (128,)
    assert w2.shape[0] == 128 and b2.shape == (C,) and C <= N_PAD
    w1_bf = w1.astype(jnp.bfloat16)
    w2_p = jnp.zeros((128, N_PAD), jnp.bfloat16).at[:, :C].set(
        w2.astype(jnp.bfloat16))
    b1_2d = b1.reshape(1, 128).astype(jnp.float32)
    b2_p = jnp.zeros((1, N_PAD), jnp.float32).at[0, :C].set(
        b2.astype(jnp.float32))
    return w1_bf, b1_2d, w2_p, b2_p


@functools.partial(jax.jit, static_argnames=("num_classes", "tile_b"))
def _policy_forward_jit(x, w1_bf, b1_2d, w2_p, b2_p, *, num_classes, tile_b):
    B, K = x.shape
    assert K == 8, "Policy.fc1 expects 8 input features"
    C = num_classes

    # Batch tiling: the tile's sublane dim must be a multiple of 8; round the
    # user tile up rather than trusting it, then pad B so the grid is exact.
    tile_b = _round_up(max(int(tile_b), 8), 8)
    b8 = _round_up(B, 8)
    tb = min(tile_b, b8)                 # both multiples of 8 -> tb % 8 == 0
    bp = _round_up(b8, tb)
    xp = x if bp == B else jnp.pad(x, ((0, bp - B), (0, 0)))

    n_steps = bp // tb
    # CORE_PARALLEL only when it can actually split work evenly across cores.
    dim_sem = _batch_dim_semantics() if (n_steps >= 2 and n_steps % 2 == 0) \
        else ("parallel",)

    out = pl.pallas_call(
        policy_kernel,
        out_shape=jax.ShapeDtypeStruct((bp, C), jnp.float32),
        grid=(n_steps,),
        in_specs=[
            # x: blocked along the batch axis (double-buffered per grid step)
            pl.BlockSpec((tb, 8), lambda i: (i, 0)),
            # weights/biases: ~70 KB, constant index_map -> VMEM-resident
            pl.BlockSpec((8, 128), lambda i: (0, 0)),
            pl.BlockSpec((1, 128), lambda i: (0, 0)),
            pl.BlockSpec((128, N_PAD), lambda i: (0, 0)),
            pl.BlockSpec((1, N_PAD), lambda i: (0, 0)),
        ],
        # Narrow output block: last dim C equals the full array extent.
        out_specs=pl.BlockSpec((tb, C), lambda i: (i, 0)),
        compiler_params=pltpu.CompilerParams(
            dimension_semantics=dim_sem,
            # Raise v5e's 16 MiB scoped default so larger tile_b still fits;
            # 32 MiB is within every generation's physical VMEM.
            vmem_limit_bytes=32 * 1024 * 1024,
        ),
    )(xp, w1_bf, b1_2d, w2_p, b2_p)

    # Only the padded batch rows need trimming (output is already C wide).
    return out if bp == B else out[:B]


def policy_forward(x, prepared_params, num_classes, tile_b=2048):
    """x: [B, 8] f32 -> [B, num_classes] f32 (forward pass of Policy)."""
    w1_bf, b1_2d, w2_p, b2_p = prepared_params
    return _policy_forward_jit(x, w1_bf, b1_2d, w2_p, b2_p,
                               num_classes=num_classes, tile_b=tile_b)


def init_policy_params(key, num_classes):
    """Deterministic synthetic init matching the PyTorch module's shapes."""
    k1, k2, k3, k4 = jax.random.split(key, 4)
    w1 = jax.random.normal(k1, (8, 128), jnp.float32) * 0.1            # fc1.weight.T
    b1 = jax.random.normal(k2, (128,), jnp.float32) * 0.1              # fc1.bias
    w2 = jax.random.normal(k3, (128, num_classes), jnp.float32) * 0.1  # fc2.weight.T
    b2 = jax.random.normal(k4, (num_classes,), jnp.float32) * 0.1      # fc2.bias
    sigma = jnp.array([0.1, 0.1], jnp.float32)  # unused in forward, kept for parity
    return w1, b1, w2, b2, sigma


def policy_forward_ref(x, w1, b1, w2, b2):
    h = jnp.tanh(x @ w1 + b1)
    return jnp.tanh(h @ w2 + b2)


if __name__ == "__main__":
    num_classes = 2      # matches sigma = [0.1, 0.1] (2-d action space)
    batch = 8

    key = jax.random.PRNGKey(0)
    kx, kp = jax.random.split(key)
    x = jax.random.normal(kx, (batch, 8), jnp.float32)
    w1, b1, w2, b2, _sigma = init_policy_params(kp, num_classes)

    # One-time prep (cached) -- nothing weight-related runs per forward call.
    params = prepare_policy_params(w1, b1, w2, b2)

    # Small-batch run (launch/DMA bound; exercises the single-tile path).
    out = jax.block_until_ready(policy_forward(x, params, num_classes))
    ref = policy_forward_ref(x, w1, b1, w2, b2)
    assert out.shape == (batch, num_classes)
    # bf16 MXU operands -> relax tolerance vs. the f32 reference.
    assert jnp.allclose(out, ref, atol=2e-2, rtol=0.0), float(
        jnp.max(jnp.abs(out - ref)))

    # Multi-tile + batch-pad path: B=1000, tile_b=256 -> grid=(4,), pad to 1024.
    big_b = 1000
    xb = jax.random.normal(jax.random.PRNGKey(1), (big_b, 8), jnp.float32)
    out_b = jax.block_until_ready(
        policy_forward(xb, params, num_classes, tile_b=256))
    ref_b = policy_forward_ref(xb, w1, b1, w2, b2)
    assert out_b.shape == (big_b, num_classes)
    assert jnp.allclose(out_b, ref_b, atol=2e-2, rtol=0.0), float(
        jnp.max(jnp.abs(out_b - ref_b)))

    print("KERNEL_OK")
</pallas_src>

<mosaic_0001>
module attributes {stable_mosaic.version = 11 : i64} {
  func.func @policy_kernel(%arg0: i32, %arg1: memref<8x8xf32, #tpu.memory_space<vmem>>, %arg2: memref<8x128xbf16, #tpu.memory_space<vmem>>, %arg3: memref<1x128xf32, #tpu.memory_space<vmem>>, %arg4: memref<128x128xbf16, #tpu.memory_space<vmem>>, %arg5: memref<1x128xf32, #tpu.memory_space<vmem>>, %arg6: memref<8x2xf32, #tpu.memory_space<vmem>>) attributes {dimension_semantics = [#tpu.dimension_semantics<parallel>], iteration_bounds = array<i64: 1>, scalar_prefetch = 0 : i64, scratch_operands = 0 : i64, tpu.core_type = #tpu.core_type<tc>, window_params = [{transform_indices = @transform_0, window_bounds = array<i64: 8, 8>}, {pipeline_mode = #tpu.pipeline_mode<synchronous>, transform_indices = @transform_1, window_bounds = array<i64: 8, 128>}, {pipeline_mode = #tpu.pipeline_mode<synchronous>, transform_indices = @transform_2, window_bounds = array<i64: 1, 128>}, {pipeline_mode = #tpu.pipeline_mode<synchronous>, transform_indices = @transform_3, window_bounds = array<i64: 128, 128>}, {pipeline_mode = #tpu.pipeline_mode<synchronous>, transform_indices = @transform_4, window_bounds = array<i64: 1, 128>}, {transform_indices = @transform_5, window_bounds = array<i64: 8, 2>}]} {
    %c0 = arith.constant 0 : index
    %c0_0 = arith.constant 0 : index
    %0 = vector.load %arg1[%c0, %c0_0] : memref<8x8xf32, #tpu.memory_space<vmem>>, vector<8x8xf32>
    %1 = arith.truncf %0 : vector<8x8xf32> to vector<8x8xbf16>
    %c0_1 = arith.constant 0 : index
    %c0_2 = arith.constant 0 : index
    %2 = vector.load %arg2[%c0_1, %c0_2] : memref<8x128xbf16, #tpu.memory_space<vmem>>, vector<8x128xbf16>
    %cst = arith.constant dense<0.000000e+00> : vector<8x128xf32>
    %3 = tpu.matmul %1, %2, %cst {dimension_numbers = #tpu.dot_dimension_numbers<[1], [0], [0], [1], [0, 0, 1, 1], [], []>} : vector<8x8xbf16>, vector<8x128xbf16>, vector<8x128xf32> -> vector<8x128xf32>
    %c0_3 = arith.constant 0 : index
    %c0_4 = arith.constant 0 : index
    %4 = vector.load %arg3[%c0_3, %c0_4] : memref<1x128xf32, #tpu.memory_space<vmem>>, vector<1x128xf32>
    %5 = vector.broadcast %4 : vector<1x128xf32> to vector<8x128xf32>
    %6 = arith.addf %3, %5 : vector<8x128xf32>
    %7 = math.tanh %6 : vector<8x128xf32>
    %8 = arith.truncf %7 : vector<8x128xf32> to vector<8x128xbf16>
    %c0_5 = arith.constant 0 : index
    %c0_6 = arith.constant 0 : index
    %9 = vector.load %arg4[%c0_5, %c0_6] : memref<128x128xbf16, #tpu.memory_space<vmem>>, vector<128x128xbf16>
    %cst_7 = arith.constant dense<0.000000e+00> : vector<8x128xf32>
    %10 = tpu.matmul %8, %9, %cst_7 {dimension_numbers = #tpu.dot_dimension_numbers<[1], [0], [0], [1], [0, 0, 1, 1], [], []>} : vector<8x128xbf16>, vector<128x128xbf16>, vector<8x128xf32> -> vector<8x128xf32>
    %c0_8 = arith.constant 0 : index
    %c0_9 = arith.constant 0 : index
    %11 = vector.load %arg5[%c0_8, %c0_9] : memref<1x128xf32, #tpu.memory_space<vmem>>, vector<1x128xf32>
    %12 = vector.broadcast %11 : vector<1x128xf32> to vector<8x128xf32>
    %13 = arith.addf %10, %12 : vector<8x128xf32>
    %14 = math.tanh %13 : vector<8x128xf32>
    %15 = vector.extract_strided_slice %14 {offsets = [0, 0], sizes = [8, 2], strides = [1, 1]} : vector<8x128xf32> to vector<8x2xf32>
    %c0_10 = arith.constant 0 : index
    %c0_11 = arith.constant 0 : index
    %16 = vector.load %arg6[%c0_10, %c0_11] : memref<8x2xf32, #tpu.memory_space<vmem>>, vector<8x2xf32>
    tpu.vector_store %arg6[%c0_10, %c0_11], %15 {strides = array<i32>} : memref<8x2xf32, #tpu.memory_space<vmem>>, vector<8x2xf32>,
    return
  }
  func.func @transform_0(%arg0: i32) -> (i32, i32) {
    %c0_i32 = arith.constant 0 : i32
    %c0_i32_0 = arith.constant 0 : i32
    return %arg0, %c0_i32 : i32, i32
  }
  func.func @transform_1(%arg0: i32) -> (i32, i32) {
    %c0_i32 = arith.constant 0 : i32
    %c0_i32_0 = arith.constant 0 : i32
    %c0_i32_1 = arith.constant 0 : i32
    return %c0_i32, %c0_i32_0 : i32, i32
  }
  func.func @transform_2(%arg0: i32) -> (i32, i32) {
    %c0_i32 = arith.constant 0 : i32
    %c0_i32_0 = arith.constant 0 : i32
    %c0_i32_1 = arith.constant 0 : i32
    return %c0_i32, %c0_i32_0 : i32, i32
  }
  func.func @transform_3(%arg0: i32) -> (i32, i32) {
    %c0_i32 = arith.constant 0 : i32
    %c0_i32_0 = arith.constant 0 : i32
    %c0_i32_1 = arith.constant 0 : i32
    return %c0_i32, %c0_i32_0 : i32, i32
  }
  func.func @transform_4(%arg0: i32) -> (i32, i32) {
    %c0_i32 = arith.constant 0 : i32
    %c0_i32_0 = arith.constant 0 : i32
    %c0_i32_1 = arith.constant 0 : i32
    return %c0_i32, %c0_i32_0 : i32, i32
  }
  func.func @transform_5(%arg0: i32) -> (i32, i32) {
    %c0_i32 = arith.constant 0 : i32
    %c0_i32_0 = arith.constant 0 : i32
    return %arg0, %c0_i32 : i32, i32
  }
}

</mosaic_0001>

<llo_original>
// kernel: _policy_forward_jit.1
$region0: #{_policy_forward_jit.1}
  #allocation0 [shape = 'u32[]', space=smem, size = 0x4, offset = 0x4, fixed_abs, tag = 'smem constant byte address 0x4 - core index']
  #allocation1 [shape = 'u32[144,128]{1,0:T(1,128)}', space=vmem, size = 0x12000, scoped, tag = 'internal scratch']
  %s0 = inlined_call_operand.hbm [shape: f32[8,8], index: 0, kind: input, shape index: {}]
  %s1 = inlined_call_operand.hbm [shape: bf16[8,128], index: 1, kind: input, shape index: {}]
  %s2 = inlined_call_operand.vmem [shape: f32[1,128], index: 2, kind: input, shape index: {}]
  %s3 = inlined_call_operand.hbm [shape: bf16[128,128], index: 3, kind: input, shape index: {}]
  %s4 = inlined_call_operand.vmem [shape: f32[1,128], index: 4, kind: input, shape index: {}]
  %s5 = inlined_call_operand.vmem [shape: f32[8,2], index: 5, kind: output, shape index: {}]
  %s6 = sld [smem:[#allocation0]]
  $region42: #{_policy_forward_jit.1} parent=0
    _
  %s8 = ssub.s32 1, %s6
  %s9 = scalar_select 0, %s8, %s6
  $region1: #{_policy_forward_jit.1} parent=0
    #allocation2 [shape = 'u8[4096]{0}', space=vmem, size = 0x1000, scoped, tag = 'input window, operand 0, single buffered']
    #allocation3 [shape = 's32[1]{0}', space=sflag, size = 0x4, scoped, tag = 'scoped memory for _policy_forward_jit.1']
    #allocation4 [shape = 'u8[2048]{0}', space=vmem, size = 0x800, scoped, tag = 'input window, operand 1, single buffered']
    #allocation5 [shape = 's32[1]{0}', space=sflag, size = 0x4, scoped, tag = 'scoped memory for _policy_forward_jit.1']
    #allocation6 [shape = 'u8[32768]{0}', space=vmem, size = 0x8000, scoped, tag = 'input window, operand 3, single buffered']
    %10 = vsyncpa [#allocation3], 0
    %11 = vsyncpa [#allocation5], 0
    // Predicated region
    $region2: #{_policy_forward_jit.1} parent=1 // pred_check
      _
    $region3: #{_policy_forward_jit.1} parent=1 // pred_check_branch
      %13 = sbr.rel (0) target = $region5
    $region4: #{_policy_forward_jit.1} parent=1 // pred_region
      %s15 = ssub.s32 128, 128
      %16 = vsyncadd [#allocation3], %s15
      %s18 = sshll.u32 [#allocation2], 4
      %s19 = int_to_ptr.vmem [resolvable:$true] %s18
      %21 = dma.hbm_to_vmem [thread:$0]  %s0, 128, %s19, [#allocation3]
    $region5: #{_policy_forward_jit.1} parent=1 // pred_fallthru
      _
    // Predicated region
    $region6: #{_policy_forward_jit.1} parent=1 // pred_check
      _
    $region7: #{_policy_forward_jit.1} parent=1 // pred_check_branch
      %23 = sbr.rel (0) target = $region9
    $region8: #{_policy_forward_jit.1} parent=1 // pred_region
      %s25 = ssub.s32 64, 64
      %26 = vsyncadd [#allocation5], %s25
      %s28 = sshll.u32 [#allocation4], 4
      %s29 = int_to_ptr.vmem [resolvable:$true] %s28
      %31 = dma.hbm_to_vmem [thread:$0]  %s1, 64, %s29, [#allocation5]
    $region9: #{_policy_forward_jit.1} parent=1 // pred_fallthru
      _
    // Predicated region
    $region10: #{_policy_forward_jit.1} parent=1 // pred_check
      _
    $region11: #{_policy_forward_jit.1} parent=1 // pred_check_branch
      %33 = sbr.rel (0) target = $region13
    $region12: #{_policy_forward_jit.1} parent=1 // pred_region
      _
    $region13: #{_policy_forward_jit.1} parent=1 // pred_fallthru
      _
    // Predicated region
    $region14: #{_policy_forward_jit.1} parent=1 // pred_check
      _
    $region15: #{_policy_forward_jit.1} parent=1 // pred_check_branch
      %35 = sbr.rel (0) target = $region17
    $region16: #{_policy_forward_jit.1} parent=1 // pred_region
      %s37 = ssub.s32 1024, 1024
      %38 = vsyncadd [#allocation5], %s37
      %s39 = sshll.u32 [#allocation6], 4
      %s40 = int_to_ptr.vmem [resolvable:$true] %s39
      %45 = dma.hbm_to_vmem [thread:$0]  %s3, 1024, %s40, [#allocation5], 64, 64, 4
    $region17: #{_policy_forward_jit.1} parent=1 // pred_fallthru
      _
    // Predicated region
    $region18: #{_policy_forward_jit.1} parent=1 // pred_check
      _
    $region19: #{_policy_forward_jit.1} parent=1 // pred_check_branch
      %47 = sbr.rel (0) target = $region21
    $region20: #{_policy_forward_jit.1} parent=1 // pred_region
      _
    $region21: #{_policy_forward_jit.1} parent=1 // pred_fallthru
      _
    // Predicated region
    $region22: #{_policy_forward_jit.1} parent=1 // pred_check
      _
    $region23: #{_policy_forward_jit.1} parent=1 // pred_check_branch
      %49 = sbr.rel (0) target = $region25
    $region24: #{_policy_forward_jit.1} parent=1 // pred_region
      %50 = dma.done [#allocation3], 128
    $region25: #{_policy_forward_jit.1} parent=1 // pred_fallthru
      _
    // Predicated region
    $region26: #{_policy_forward_jit.1} parent=1 // pred_check
      _
    $region27: #{_policy_forward_jit.1} parent=1 // pred_check_branch
      %52 = sbr.rel (0) target = $region29
    $region28: #{_policy_forward_jit.1} parent=1 // pred_region
      %53 = dma.done [#allocation5], 64
    $region29: #{_policy_forward_jit.1} parent=1 // pred_fallthru
      _
    // Predicated region
    $region30: #{_policy_forward_jit.1} parent=1 // pred_check
      _
    $region31: #{_policy_forward_jit.1} parent=1 // pred_check_branch
      %55 = sbr.rel (0) target = $region33
    $region32: #{_policy_forward_jit.1} parent=1 // pred_region
      %56 = dma.done [#allocation5], 1024
    $region33: #{_policy_forward_jit.1} parent=1 // pred_fallthru
      _
    %v58 = vld [vmem:[#allocation2] sm:$0xff]
    %v59 = vpack.c.bf16 %v58, %v58
    %v60 = vld [vmem:[#allocation4] sm:$0xf]
    %v61 = vld [vmem:[%s2] sm:$0x1]
    %v63 = vlaneseq
    %v64 = vshrl.u32 %v63, 7
    %v65 = vsub.s32 0, %v64
    %v66 = vrot.slane %v61, %v65
    %vm68 = vcmask 64512
    %v70 = vsel %vm68, %v59, 0
    %vm72 = vcmask 1043456
    %v74 = vsel %vm72, %v60, 0
    %76 = vmatprep.subr.bf16.mxu0 0
    %77 = vmatpush1.bf16.msra.mxu0 %v74
    %78 = vmatprep.subr.bf16.mxu0 0
    %79 = vmatpush1.bf16.msra.mxu0 0
    %80 = vmatprep.subr.bf16.mxu0 0
    %81 = vmatpush1.bf16.msra.mxu0 0
    %82 = vmatprep.subr.bf16.mxu0 0
    %83 = vmatpush1.bf16.msra.mxu0 0
    %84 = vmatprep.subr.bf16.mxu0 0
    %85 = vmatpush1.bf16.msra.mxu0 0
    %86 = vmatprep.subr.bf16.mxu0 0
    %87 = vmatpush1.bf16.msra.mxu0 0
    %88 = vmatprep.subr.bf16.mxu0 0
    %89 = vmatpush1.bf16.msra.mxu0 0
    %90 = vmatprep.subr.bf16.mxu0 0
    %91 = vmatpush1.bf16.msra.mxu0 0
    %92 = vmatprep.subr.bf16.mxu0 0
    %93 = vmatpush1.bf16.msra.mxu0 0
    %94 = vmatprep.subr.bf16.mxu0 0
    %95 = vmatpush1.bf16.msra.mxu0 0
    %96 = vmatprep.subr.bf16.mxu0 0
    %97 = vmatpush1.bf16.msra.mxu0 0
    %98 = vmatprep.subr.bf16.mxu0 0
    %99 = vmatpush1.bf16.msra.mxu0 0
    %100 = vmatprep.subr.bf16.mxu0 0
    %101 = vmatpush1.bf16.msra.mxu0 0
    %102 = vmatprep.subr.bf16.mxu0 0
    %103 = vmatpush1.bf16.msra.mxu0 0
    %104 = vmatprep.subr.bf16.mxu0 0
    %105 = vmatpush1.bf16.msra.mxu0 0
    %106 = vmatprep.subr.bf16.mxu0 0
    %107 = vmatpush1.bf16.msra.mxu0 0
    %108 = vmatprep.mubr.bf16.mxu0 0
    %109 = vmatmul.mubr.bf16.gmra.mrb[0].mxu0 %v70
    %v110 = vpop.f32.mrb[0].mxu0
    %v111 = vadd.f32 %v66, %v110
    %v112 = vpop.f32.mrb[0].mxu0
    %v113 = vpop.f32.mrb[0].mxu0
    %v114 = vpop.f32.mrb[0].mxu0
    %115 = vdwg.mxu0
    %v116 = vtanh.pop %v111
    %v117 = vpack.c.bf16 %v116, %v116
    %v118 = vld [vmem:[#allocation6] sm:$0xf]
    %v119 = vld [vmem:[#allocation6 + $0x4] sm:$0xf]
    %v120 = vld [vmem:[#allocation6 + $0x8] sm:$0xf]
    %v121 = vld [vmem:[#allocation6 + $0xc] sm:$0xf]
    %v122 = vld [vmem:[#allocation6 + $0x10] sm:$0xf]
    %v123 = vld [vmem:[#allocation6 + $0x14] sm:$0xf]
    %v124 = vld [vmem:[#allocation6 + $0x18] sm:$0xf]
    %v125 = vld [vmem:[#allocation6 + $0x1c] sm:$0xf]
    %v126 = vld [vmem:[#allocation6 + $0x20] sm:$0xf]
    %v127 = vld [vmem:[#allocation6 + $0x24] sm:$0xf]
    %v128 = vld [vmem:[#allocation6 + $0x28] sm:$0xf]
    %v129 = vld [vmem:[#allocation6 + $0x2c] sm:$0xf]
    %v130 = vld [vmem:[#allocation6 + $0x30] sm:$0xf]
    %v131 = vld [vmem:[#allocation6 + $0x34] sm:$0xf]
    %v132 = vld [vmem:[#allocation6 + $0x38] sm:$0xf]
    %v133 = vld [vmem:[#allocation6 + $0x3c] sm:$0xf]
    %v134 = vld [vmem:[%s4] sm:$0x1]
    %v136 = vlaneseq
    %v137 = vshrl.u32 %v136, 7
    %v138 = vsub.s32 0, %v137
    %v139 = vrot.slane %v134, %v138
    %v157 = vunpack.c.l.b16 %v118
    %v158 = vunpack.c.l.b16 %v119
    %v159 = vunpack.c.l.b16 %v120
    %v160 = vunpack.c.l.b16 %v121
    %v161 = vunpack.c.l.b16 %v122
    %v162 = vunpack.c.l.b16 %v123
    %v163 = vunpack.c.l.b16 %v124
    %v164 = vunpack.c.l.b16 %v125
    %v165 = vunpack.c.l.b16 %v126
    %v166 = vunpack.c.l.b16 %v127
    %v167 = vunpack.c.l.b16 %v128
    %v168 = vunpack.c.l.b16 %v129
    %v169 = vunpack.c.l.b16 %v130
    %v170 = vunpack.c.l.b16 %v131
    %v171 = vunpack.c.l.b16 %v132
    %v172 = vunpack.c.l.b16 %v133
    %v173 = vpack.c.b16 %v158, %v157
    %v174 = vpack.c.b16 %v160, %v159
    %v175 = vpack.c.b16 %v162, %v161
    %v176 = vpack.c.b16 %v164, %v163
    %v177 = vpack.c.b16 %v166, %v165
    %v178 = vpack.c.b16 %v168, %v167
    %v179 = vpack.c.b16 %v170, %v169
    %v180 = vpack.c.b16 %v172, %v171
    %189 = vmatprep.subr.bf16.mxu0 0
    %190 = vmatpush1.bf16.msra.mxu0 %v173
    %191 = vmatprep.subr.bf16.mxu0 0
    %192 = vmatpush1.bf16.msra.mxu0 %v174
    %193 = vmatprep.subr.bf16.mxu0 0
    %194 = vmatpush1.bf16.msra.mxu0 %v175
    %195 = vmatprep.subr.bf16.mxu0 0
    %196 = vmatpush1.bf16.msra.mxu0 %v176
    %197 = vmatprep.subr.bf16.mxu0 0
    %198 = vmatpush1.bf16.msra.mxu0 %v177
    %199 = vmatprep.subr.bf16.mxu0 0
    %200 = vmatpush1.bf16.msra.mxu0 %v178
    %201 = vmatprep.subr.bf16.mxu0 0
    %202 = vmatpush1.bf16.msra.mxu0 %v179
    %203 = vmatprep.subr.bf16.mxu0 0
    %204 = vmatpush1.bf16.msra.mxu0 %v180
    %205 = vmatprep.subr.bf16.mxu0 0
    %206 = vmatpush1.bf16.msra.mxu0 0
    %207 = vmatprep.subr.bf16.mxu0 0
    %208 = vmatpush1.bf16.msra.mxu0 0
    %209 = vmatprep.subr.bf16.mxu0 0
    %210 = vmatpush1.bf16.msra.mxu0 0
    %211 = vmatprep.subr.bf16.mxu0 0
    %212 = vmatpush1.bf16.msra.mxu0 0
    %213 = vmatprep.subr.bf16.mxu0 0
    %214 = vmatpush1.bf16.msra.mxu0 0
    %215 = vmatprep.subr.bf16.mxu0 0
    %216 = vmatpush1.bf16.msra.mxu0 0
    %217 = vmatprep.subr.bf16.mxu0 0
    %218 = vmatpush1.bf16.msra.mxu0 0
    %219 = vmatprep.subr.bf16.mxu0 0
    %220 = vmatpush1.bf16.msra.mxu0 0
    %221 = vmatprep.mubr.bf16.mxu0 0
    %222 = vmatmul.mubr.bf16.gmra.mrb[0].mxu0 %v117
    %v223 = vpop.f32.mrb[0].mxu0
    %v224 = vadd.f32 %v139, %v223
    %v225 = vpop.f32.mrb[0].mxu0
    %v226 = vpop.f32.mrb[0].mxu0
    %v227 = vpop.f32.mrb[0].mxu0
    %228 = vdwg.mxu0
    %v229 = vtanh.pop %v224
    %vm230 = vcmask 15360
    %231 = vst.msk [vmem:[%s5] sm:$0xff] %vm230, %v229
    // Predicated region
    $region34: #{_policy_forward_jit.1} parent=1 // pred_check
      _
    $region35: #{_policy_forward_jit.1} parent=1 // pred_check_branch
      %233 = sbr.rel (0) target = $region37
    $region36: #{_policy_forward_jit.1} parent=1 // pred_region
      _
    $region37: #{_policy_forward_jit.1} parent=1 // pred_fallthru
      _
    // Predicated region
    $region38: #{_policy_forward_jit.1} parent=1 // pred_check
      _
    $region39: #{_policy_forward_jit.1} parent=1 // pred_check_branch
      %235 = sbr.rel (0) target = $region41
    $region40: #{_policy_forward_jit.1} parent=1 // pred_region
      _
    $region41: #{_policy_forward_jit.1} parent=1 // pred_fallthru
      _
    %236 = vsyncpa [#allocation3], 1
    %237 = vsyncpa [#allocation5], 1

</llo_original>
